<compile_context>
chip_gen: v7x
topology: tpu7x:2x2x1
jax: 0.10.0
libtpu: 0.0.40
codegen_flags: <defaults>
</compile_context>

<pallas_src>
import functools

import jax
import jax.numpy as jnp
import numpy as np
from jax.experimental import pallas as pl
from jax.experimental.pallas import tpu as pltpu


def upsample_phase_kernel(x_ref, w_ref, b_ref, ye_ref, yo_ref, *, T):
    """One (batch, v-block) step.

    x_ref : (1, C, Lb)   NCHW slab, Lb = Vb * T, channels on sublanes
    w_ref : (4C, C)      fused transposed weights [W1^T; W2^T; W3^T; W0^T]
    b_ref : (C, 1)       bias column (f32)
    ye_ref: (1, C, Lb)   even output phase  y[..., 2t]
    yo_ref: (1, C, Lb)   odd  output phase  y[..., 2t+1]
    """
    C = b_ref.shape[0]
    x = x_ref[0]                                      # (C, Lb)
    Lb = x.shape[-1]

    # One fused MXU matmul: (4C, C) @ (C, Lb), f32 accumulation.
    a = jnp.dot(w_ref[...], x, preferred_element_type=jnp.float32)   # (4C, Lb)

    a1 = a[:C]             # x[t] @ W1  -> y[2t]
    a2 = a[C:2 * C]        # x[t] @ W2  -> y[2t+1]
    a3 = a[2 * C:3 * C]    # x[t] @ W3  -> y[2t+2]  (needed at lane t from lane t-1)
    a0 = a[3 * C:]         # x[t] @ W0  -> y[2t-1]  (needed at lane t from lane t+1)

    # Lane rolls on the XLU.  Wrap-around values land exactly on the masked
    # t==0 / t==T-1 positions (this also covers v- and block-boundaries).
    prev = pltpu.roll(a3, 1, 1)          # prev[:, l] = a3[:, l-1]
    nxt = pltpu.roll(a0, Lb - 1, 1)      # nxt[:, l]  = a0[:, l+1]

    # Cheap boundary masks: a single (1, Lb) iota row, broadcast over channels.
    t_idx = jax.lax.broadcasted_iota(jnp.int32, (1, Lb), 1) % T
    bias = b_ref[...].astype(jnp.float32)             # (C, 1) lane-broadcast

    even = a1 + jnp.where(t_idx == 0, 0.0, prev) + bias        # y[..., 2t]
    odd = a2 + jnp.where(t_idx == T - 1, 0.0, nxt) + bias      # y[..., 2t+1]

    ye_ref[0] = even.astype(ye_ref.dtype)
    yo_ref[0] = odd.astype(yo_ref.dtype)


def _vmem_limit_bytes():
    """Per-generation VMEM limit: ~75% of physical, capped at 100 MiB.

    v5e/v6e (128 MiB physical) -> 96 MiB ; v7x (64 MiB) -> 48 MiB.
    """
    phys = 64 * 1024 * 1024
    try:
        info = pltpu.get_tpu_info()
        phys = getattr(info, "vmem_capacity_bytes", phys) or phys
    except Exception:
        pass
    return int(min(0.75 * phys, 100 * 1024 * 1024))


def _block_bytes(vb, C, T, in_item, out_item):
    Lb = vb * T
    inp = 2 * C * Lb * in_item            # input block, double-buffered
    outs = 2 * 2 * C * Lb * out_item      # two phase-output blocks, double-buffered
    tmp = 10 * C * Lb * 4                 # f32 intermediates (4C matmul rows, rolls, even/odd)
    return inp + outs + tmp


def _pick_vblock(B, C, V, T, in_item, out_item, budget):
    """Largest legal v-block under the VMEM budget, preferring >= 8 grid steps."""
    # Legality: block last dim (vb*T) must be a multiple of 128 or the full V*T.
    legal = [vb for vb in range(1, V + 1)
             if V % vb == 0 and ((vb * T) % 128 == 0 or vb == V)]
    # Fixed per-call VMEM: double-buffered fused weight (4C, C) + bias + headroom.
    fixed = 2 * (4 * C) * C * in_item + 2 * C * 4 + (1 << 20)
    fits = [vb for vb in legal if fixed + _block_bytes(vb, C, T, in_item, out_item) <= budget]
    pool = fits if fits else [min(legal)]     # smallest legal block as a fallback
    # Keep >= 8 total grid steps when possible (>= 4 per TensorCore on v7x) so
    # DMA / compute / writeback software-pipeline; otherwise take the largest.
    piped = [vb for vb in pool if B * (V // vb) >= 8]
    pick = piped if piped else pool
    return max(pick, key=lambda vb: vb * T)


def upsample_forward(x, weight, bias, *, compute_dtype=None, out_dtype=None):
    """ConvTranspose2d(c_in, c_in, (1, 4), stride=(1, 2), padding=(0, 1)).

    x      : (B, C, V, T)  NCHW (bf16 recommended in production)
    weight : (C_in, C_out, 1, 4)  PyTorch ConvTranspose2d layout
    bias   : (C_out,)
    The module's `t` / `supports` forward args are unused by the PyTorch block.
    Returns (B, C, V, 2*T) in out_dtype (defaults to x.dtype).
    """
    B, C, V, T = x.shape
    if C % 8 != 0:
        # TODO(synk): pad channels to a multiple of 8 (sublane granularity) for odd C.
        raise ValueError("c_in must be a multiple of 8 for this kernel")

    cdt = jnp.dtype(compute_dtype) if compute_dtype is not None else x.dtype
    odt = jnp.dtype(out_dtype) if out_dtype is not None else x.dtype

    # Free reshape (merges the two trailing contiguous dims); no transpose.
    x3 = x.reshape(B, C, V * T)
    if x3.dtype != cdt:
        # NOTE: in the real model this convert fuses into the producer.
        x3 = x3.astype(cdt)

    # Fused, pre-transposed weight: rows = [W1^T; W2^T; W3^T; W0^T]  (4C, C).
    # Output-phase decomposition of the transposed conv:
    #   y[2t]   = x[t] @ W1 + x[t-1] @ W3 + b
    #   y[2t+1] = x[t] @ W2 + x[t+1] @ W0 + b
    wk = weight[:, :, 0, :]                                  # (C_in, C_out, 4)
    w_t = jnp.concatenate(
        [wk[..., 1].T, wk[..., 2].T, wk[..., 3].T, wk[..., 0].T], axis=0
    ).astype(cdt)                                            # (4C, C)
    b2 = bias.reshape(C, 1).astype(jnp.float32)              # (C, 1)

    vmem_limit = _vmem_limit_bytes()
    vb = _pick_vblock(B, C, V, T, x3.dtype.itemsize, jnp.dtype(odt).itemsize,
                      vmem_limit)
    Lb = vb * T

    y_even, y_odd = pl.pallas_call(
        functools.partial(upsample_phase_kernel, T=T),
        out_shape=(
            jax.ShapeDtypeStruct((B, C, V * T), odt),
            jax.ShapeDtypeStruct((B, C, V * T), odt),
        ),
        grid_spec=pltpu.PrefetchScalarGridSpec(
            num_scalar_prefetch=0,
            grid=(B, V // vb),
            in_specs=[
                pl.BlockSpec((1, C, Lb), lambda b, j: (b, 0, j)),
                pl.BlockSpec((4 * C, C), lambda b, j: (0, 0)),
                pl.BlockSpec((C, 1), lambda b, j: (0, 0)),
            ],
            out_specs=[
                pl.BlockSpec((1, C, Lb), lambda b, j: (b, 0, j)),
                pl.BlockSpec((1, C, Lb), lambda b, j: (b, 0, j)),
            ],
        ),
        compiler_params=pltpu.CompilerParams(
            dimension_semantics=("parallel", "parallel"),
            vmem_limit_bytes=vmem_limit,
        ),
    )(x3, w_t, b2)

    # Even/odd time interleave back to NCHW — one XLA fusion over the output.
    # TODO(synk): fuse into the consumer (or keep the phase-split pair) in the model.
    y = jnp.stack(
        [y_even.reshape(B, C, V, T), y_odd.reshape(B, C, V, T)], axis=-1
    ).reshape(B, C, V, 2 * T)
    return y


def reference(x, w, b):
    """Scatter-form numpy reference of PyTorch ConvTranspose2d((1,4),(1,2),(0,1))."""
    B, C, V, T = x.shape
    y = np.zeros((B, C, V, 2 * T), np.float32)
    for ti in range(T):
        for kt in range(4):
            to = 2 * ti + kt - 1
            if 0 <= to < 2 * T:
                y[:, :, :, to] += np.einsum('biv,io->bov', x[:, :, :, ti], w[:, :, 0, kt])
    return y + b[None, :, None, None]


if __name__ == "__main__":
    key = jax.random.PRNGKey(0)
    B, C, V, T = 2, 8, 4, 16
    kx, kw, kb = jax.random.split(key, 3)

    x = jax.random.normal(kx, (B, C, V, T), jnp.float32)
    # torch-default-style init: uniform(-1/sqrt(fan_in), 1/sqrt(fan_in))
    fan = C * 1 * 4
    bound = 1.0 / np.sqrt(fan)
    weight = jax.random.uniform(kw, (C, C, 1, 4), jnp.float32, -bound, bound)
    bias = jax.random.uniform(kb, (C,), jnp.float32, -bound, bound)

    y_ref = reference(np.asarray(x), np.asarray(weight), np.asarray(bias))

    # Exact f32 path.
    y32 = jax.block_until_ready(upsample_forward(x, weight, bias))
    assert y32.shape == (B, C, V, 2 * T)
    np.testing.assert_allclose(np.asarray(y32), y_ref, rtol=1e-5, atol=1e-5)

    # bf16 path (production default: halves HBM traffic, bf16-native MXU on
    # v5e / v6e / v7x); f32 accumulation inside the kernel.
    y16 = jax.block_until_ready(
        upsample_forward(x.astype(jnp.bfloat16), weight, bias))
    assert y16.dtype == jnp.bfloat16 and y16.shape == (B, C, V, 2 * T)
    np.testing.assert_allclose(np.asarray(y16.astype(jnp.float32)), y_ref,
                               rtol=1e-1, atol=1e-1)

    print("KERNEL_OK")
</pallas_src>

<mosaic_0001>
module attributes {stable_mosaic.version = 11 : i64} {
  func.func @upsample_phase_kernel(%arg0: i32, %arg1: i32, %arg2: memref<1x8x64xf32, #tpu.memory_space<vmem>>, %arg3: memref<32x8xf32, #tpu.memory_space<vmem>>, %arg4: memref<8x1xf32, #tpu.memory_space<vmem>>, %arg5: memref<1x8x64xf32, #tpu.memory_space<vmem>>, %arg6: memref<1x8x64xf32, #tpu.memory_space<vmem>>) attributes {dimension_semantics = [#tpu.dimension_semantics<parallel>, #tpu.dimension_semantics<parallel>], iteration_bounds = array<i64: 2, 1>, scalar_prefetch = 0 : i64, scratch_operands = 0 : i64, tpu.core_type = #tpu.core_type<tc>, window_params = [{transform_indices = @transform_0, window_bounds = array<i64: 1, 8, 64>}, {pipeline_mode = #tpu.pipeline_mode<synchronous>, transform_indices = @transform_1, window_bounds = array<i64: 32, 8>}, {pipeline_mode = #tpu.pipeline_mode<synchronous>, transform_indices = @transform_2, window_bounds = array<i64: 8, 1>}, {transform_indices = @transform_3, window_bounds = array<i64: 1, 8, 64>}, {transform_indices = @transform_4, window_bounds = array<i64: 1, 8, 64>}]} {
    %c0 = arith.constant 0 : index
    %c0_0 = arith.constant 0 : index
    %c0_1 = arith.constant 0 : index
    %0 = vector.load %arg2[%c0, %c0_0, %c0_1] : memref<1x8x64xf32, #tpu.memory_space<vmem>>, vector<1x8x64xf32>
    %1 = vector.shape_cast %0 : vector<1x8x64xf32> to vector<8x64xf32>
    %c0_2 = arith.constant 0 : index
    %c0_3 = arith.constant 0 : index
    %2 = vector.load %arg3[%c0_2, %c0_3] : memref<32x8xf32, #tpu.memory_space<vmem>>, vector<32x8xf32>
    %cst = arith.constant dense<0.000000e+00> : vector<32x64xf32>
    %3 = tpu.matmul %2, %1, %cst {dimension_numbers = #tpu.dot_dimension_numbers<[1], [0], [0], [1], [0, 0, 1, 1], [], []>} : vector<32x8xf32>, vector<8x64xf32>, vector<32x64xf32> -> vector<32x64xf32>
    %4 = vector.extract_strided_slice %3 {offsets = [0, 0], sizes = [8, 64], strides = [1, 1]} : vector<32x64xf32> to vector<8x64xf32>
    %5 = vector.extract_strided_slice %3 {offsets = [8, 0], sizes = [8, 64], strides = [1, 1]} : vector<32x64xf32> to vector<8x64xf32>
    %6 = vector.extract_strided_slice %3 {offsets = [16, 0], sizes = [8, 64], strides = [1, 1]} : vector<32x64xf32> to vector<8x64xf32>
    %7 = vector.extract_strided_slice %3 {offsets = [24, 0], sizes = [8, 64], strides = [1, 1]} : vector<32x64xf32> to vector<8x64xf32>
    %c1_i32 = arith.constant 1 : i32
    %8 = tpu.dynamic_rotate %6 by %c1_i32 dim 1 : vector<8x64xf32>, i32 -> vector<8x64xf32>
    %c63_i32 = arith.constant 63 : i32
    %9 = tpu.dynamic_rotate %7 by %c63_i32 dim 1 : vector<8x64xf32>, i32 -> vector<8x64xf32>
    %10 = tpu.iota {dimensions = array<i32: 1>} : vector<1x64xi32>
    %c16_i32 = arith.constant 16 : i32
    %c0_i32 = arith.constant 0 : i32
    %11 = arith.cmpi eq, %c16_i32, %c0_i32 : i32
    %c1_i32_4 = arith.constant 1 : i32
    %12 = arith.select %11, %c1_i32_4, %c16_i32 : i32
    %13 = vector.broadcast %12 : i32 to vector<1x64xi32>
    %14 = arith.remsi %10, %13 : vector<1x64xi32>
    %c0_i32_5 = arith.constant 0 : i32
    %15 = vector.broadcast %c0_i32_5 : i32 to vector<1x64xi32>
    %16 = arith.cmpi ne, %14, %15 : vector<1x64xi32>
    %c0_i32_6 = arith.constant 0 : i32
    %17 = vector.broadcast %c0_i32_6 : i32 to vector<1x64xi32>
    %18 = arith.cmpi slt, %14, %17 : vector<1x64xi32>
    %c0_i32_7 = arith.constant 0 : i32
    %19 = arith.cmpi slt, %12, %c0_i32_7 : i32
    %20 = vector.broadcast %19 : i1 to vector<1x64xi1>
    %21 = vector.broadcast %20 : vector<1x64xi1> to vector<1x64xi1>
    %22 = arith.xori %18, %21 : vector<1x64xi1>
    %23 = arith.andi %22, %16 : vector<1x64xi1>
    %24 = vector.broadcast %12 : i32 to vector<1x64xi32>
    %25 = arith.addi %14, %24 : vector<1x64xi32>
    %26 = arith.select %23, %25, %14 : vector<1x64xi1>, vector<1x64xi32>
    %c0_8 = arith.constant 0 : index
    %c0_9 = arith.constant 0 : index
    %27 = vector.load %arg4[%c0_8, %c0_9] : memref<8x1xf32, #tpu.memory_space<vmem>>, vector<8x1xf32>
    %c0_i32_10 = arith.constant 0 : i32
    %28 = vector.broadcast %c0_i32_10 : i32 to vector<1x64xi32>
    %29 = arith.cmpi eq, %26, %28 : vector<1x64xi32>
    %cst_11 = arith.constant 0.000000e+00 : f32
    %30 = vector.shape_cast %29 : vector<1x64xi1> to vector<1x64xi1>
    %31 = vector.broadcast %30 : vector<1x64xi1> to vector<8x64xi1>
    %32 = vector.broadcast %cst_11 : f32 to vector<8x64xf32>
    %33 = arith.select %31, %32, %8 : vector<8x64xi1>, vector<8x64xf32>
    %34 = arith.addf %4, %33 : vector<8x64xf32>
    %35 = vector.broadcast %27 : vector<8x1xf32> to vector<8x64xf32>
    %36 = arith.addf %34, %35 : vector<8x64xf32>
    %c15_i32 = arith.constant 15 : i32
    %37 = vector.broadcast %c15_i32 : i32 to vector<1x64xi32>
    %38 = arith.cmpi eq, %26, %37 : vector<1x64xi32>
    %cst_12 = arith.constant 0.000000e+00 : f32
    %39 = vector.shape_cast %38 : vector<1x64xi1> to vector<1x64xi1>
    %40 = vector.broadcast %39 : vector<1x64xi1> to vector<8x64xi1>
    %41 = vector.broadcast %cst_12 : f32 to vector<8x64xf32>
    %42 = arith.select %40, %41, %9 : vector<8x64xi1>, vector<8x64xf32>
    %43 = arith.addf %5, %42 : vector<8x64xf32>
    %44 = vector.broadcast %27 : vector<8x1xf32> to vector<8x64xf32>
    %45 = arith.addf %43, %44 : vector<8x64xf32>
    %c0_13 = arith.constant 0 : index
    %c0_14 = arith.constant 0 : index
    %c0_15 = arith.constant 0 : index
    %46 = vector.load %arg5[%c0_13, %c0_14, %c0_15] : memref<1x8x64xf32, #tpu.memory_space<vmem>>, vector<1x8x64xf32>
    %47 = vector.shape_cast %46 : vector<1x8x64xf32> to vector<8x64xf32>
    %48 = vector.shape_cast %36 : vector<8x64xf32> to vector<1x8x64xf32>
    tpu.vector_store %arg5[%c0_13, %c0_14, %c0_15], %48 {strides = array<i32>} : memref<1x8x64xf32, #tpu.memory_space<vmem>>, vector<1x8x64xf32>,
    %c0_16 = arith.constant 0 : index
    %c0_17 = arith.constant 0 : index
    %c0_18 = arith.constant 0 : index
    %49 = vector.load %arg6[%c0_16, %c0_17, %c0_18] : memref<1x8x64xf32, #tpu.memory_space<vmem>>, vector<1x8x64xf32>
    %50 = vector.shape_cast %49 : vector<1x8x64xf32> to vector<8x64xf32>
    %51 = vector.shape_cast %45 : vector<8x64xf32> to vector<1x8x64xf32>
    tpu.vector_store %arg6[%c0_16, %c0_17, %c0_18], %51 {strides = array<i32>} : memref<1x8x64xf32, #tpu.memory_space<vmem>>, vector<1x8x64xf32>,
    return
  }
  func.func @transform_0(%arg0: i32, %arg1: i32) -> (i32, i32, i32) {
    %c0_i32 = arith.constant 0 : i32
    %c0_i32_0 = arith.constant 0 : i32
    return %arg0, %c0_i32, %arg1 : i32, i32, i32
  }
  func.func @transform_1(%arg0: i32, %arg1: i32) -> (i32, i32) {
    %c0_i32 = arith.constant 0 : i32
    %c0_i32_0 = arith.constant 0 : i32
    %c0_i32_1 = arith.constant 0 : i32
    return %c0_i32, %c0_i32_0 : i32, i32
  }
  func.func @transform_2(%arg0: i32, %arg1: i32) -> (i32, i32) {
    %c0_i32 = arith.constant 0 : i32
    %c0_i32_0 = arith.constant 0 : i32
    %c0_i32_1 = arith.constant 0 : i32
    return %c0_i32, %c0_i32_0 : i32, i32
  }
  func.func @transform_3(%arg0: i32, %arg1: i32) -> (i32, i32, i32) {
    %c0_i32 = arith.constant 0 : i32
    %c0_i32_0 = arith.constant 0 : i32
    return %arg0, %c0_i32, %arg1 : i32, i32, i32
  }
  func.func @transform_4(%arg0: i32, %arg1: i32) -> (i32, i32, i32) {
    %c0_i32 = arith.constant 0 : i32
    %c0_i32_0 = arith.constant 0 : i32
    return %arg0, %c0_i32, %arg1 : i32, i32, i32
  }
}

</mosaic_0001>

<llo_original>
// kernel: tpu_custom_call.1
$region0: #{tpu_custom_call.1}
  #allocation0 [shape = 'u32[]', space=smem, size = 0x4, offset = 0x4, fixed_abs, tag = 'smem constant byte address 0x4 - core index']
  #allocation1 [shape = 'u32[144,128]{1,0:T(1,128)}', space=vmem, size = 0x12000, scoped, tag = 'internal scratch']
  %s0 = inlined_call_operand.vmem [shape: f32[2,8,64], index: 0, kind: input, shape index: {}]
  %s1 = inlined_call_operand.vmem [shape: f32[32,8], index: 1, kind: input, shape index: {}]
  %s2 = inlined_call_operand.vmem [shape: f32[8,1], index: 2, kind: input, shape index: {}]
  %s3 = inlined_call_operand.hbm [shape: f32[2,8,64], index: 3, kind: output, shape index: {0}]
  %s4 = inlined_call_operand.hbm [shape: f32[2,8,64], index: 4, kind: output, shape index: {1}]
  %5 = xla_tuple %s3, %s4
  %s6 = sld [smem:[#allocation0]]
  $region53: #{tpu_custom_call.1} parent=0
    _
  %s8 = ssub.s32 1, %s6
  %s9 = scalar_select 0, %s8, %s6
  $region1: #{tpu_custom_call.1} parent=0
    #allocation2 [shape = 'u8[8192]{0}', space=vmem, size = 0x2000, scoped, tag = 'output window, operand 0']
    #allocation3 [shape = 's32[2]{0}', space=sflag, size = 0x8, scoped, tag = 'scoped memory for tpu_custom_call.1']
    #allocation4 [shape = 'u8[8192]{0}', space=vmem, size = 0x2000, scoped, tag = 'output window, operand 1']
    #allocation5 [shape = 's32[2]{0}', space=sflag, size = 0x8, scoped, tag = 'scoped memory for tpu_custom_call.1']
    %10 = vsyncpa [#allocation3], 0
    %s11 = scalar_lea.sflag [#allocation3], 1
    %12 = vsyncpa %s11, 0
    %13 = vsyncpa [#allocation5], 0
    %s14 = scalar_lea.sflag [#allocation5], 1
    %15 = vsyncpa %s14, 0
    loop: start=0, step=1, limit=4
    $region2: #{tpu_custom_call.1} parent=1 // loop_pre_header
      _
    $region3: #{tpu_custom_call.1} parent=1 // loop_header
      %s17 = sphi 0, %s21
      %p18 = scmp.ge.s32.totalorder %s17, 4
      %s24 = sphi 0, %s36
      %s25 = sphi 0, %s32
      %s26 = sphi 0, %s24
      %s27 = sphi 0, %s25
      %s28 = sphi 0, %s26
      %s29 = sphi 0, %s27
      %s41 = sphi 0, %s43
      %s44 = sphi 0, %s41
      %s45 = sphi 0, %s44
      %s61 = sphi 0, %s45
      %s65 = sphi 0, %s65
      %s67 = sphi 0, %s65
      %s68 = sphi 0, %s67
      %s82 = sphi 0, %s68
      %s86 = sphi 0, %s86
      %s88 = sphi 0, %s86
      %s89 = sphi 0, %s88
      %s103 = sphi 0, %s89
      %s111 = sphi 0, %s113
      %s114 = sphi 0, %s111
      %s115 = sphi 0, %s114
      %s131 = sphi 0, %s115
      %s139 = sphi 0, %s141
      %s142 = sphi 0, %s139
      %s143 = sphi 0, %s142
      %s159 = sphi 0, %s143
    $region4: #{tpu_custom_call.1} parent=1 // loop_header_branch
      %20 = sbr.rel (%p18) target = $region8
    $region5: #{tpu_custom_call.1} parent=1 // loop_body
      %s22 = ssub.s32 %s17, 1
      %s23 = ssub.s32 %s17, 2
      %s30 = sadd.s32 1, %s25
      %p31 = scmp.ge.s32.totalorder %s30, 1
      %s32 = scalar_select %p31, 0, %s30
      %s33 = sadd.s32 1, %s24
      %s34 = scalar_select %p31, %s33, %s24
      %p35 = scmp.ge.s32.totalorder %s34, 2
      %s36 = scalar_select %p35, 0, %s34
      %s37 = ssub.s32 %s24, %s36
      %s38 = ssub.s32 %s25, %s32
      %s39 = sor.u32 %s37, %s38
      %p40 = scmp.eq.s32.totalorder %s39, 0
      %s42 = sadd.s32 %s41, 1
      %s43 = scalar_select %p40, %s41, %s42
      %p46 = pneg %p40
      %p47 = scmp.eq.s32.totalorder %s17, 1
      %p48 = por %p46, %p47
      %p49 = scmp.ne.s32.totalorder %s41, %s44
      %p50 = scmp.eq.s32.totalorder %s17, 0
      %p51 = por %p49, %p50
      %p52 = scmp.ne.s32.totalorder %s41, %s44
      %p53 = scmp.eq.s32.totalorder %s22, 1
      %p54 = por %p52, %p53
      %p55 = scmp.ne.s32.totalorder %s44, %s45
      %p56 = scmp.eq.s32.totalorder %s22, 0
      %p57 = por %p55, %p56
      %p58 = scmp.ne.s32.totalorder %s44, %s45
      %p59 = scmp.eq.s32.totalorder %s23, 1
      %p60 = por %p58, %p59
      %p62 = scmp.ne.s32.totalorder %s45, %s61
      %p63 = scmp.eq.s32.totalorder %s23, 0
      %p64 = por %p62, %p63
      %s66 = sadd.s32 %s65, 1
      %p69 = scmp.eq.s32.totalorder %s17, 1
      %p70 = scmp.ne.s32.totalorder %s65, %s67
      %p71 = scmp.eq.s32.totalorder %s17, 0
      %p72 = por %p70, %p71
      %p73 = scmp.ne.s32.totalorder %s65, %s67
      %p74 = scmp.eq.s32.totalorder %s22, 1
      %p75 = por %p73, %p74
      %p76 = scmp.ne.s32.totalorder %s67, %s68
      %p77 = scmp.eq.s32.totalorder %s22, 0
      %p78 = por %p76, %p77
      %p79 = scmp.ne.s32.totalorder %s67, %s68
      %p80 = scmp.eq.s32.totalorder %s23, 1
      %p81 = por %p79, %p80
      %p83 = scmp.ne.s32.totalorder %s68, %s82
      %p84 = scmp.eq.s32.totalorder %s23, 0
      %p85 = por %p83, %p84
      %s87 = sadd.s32 %s86, 1
      %p90 = scmp.eq.s32.totalorder %s17, 1
      %p91 = scmp.ne.s32.totalorder %s86, %s88
      %p92 = scmp.eq.s32.totalorder %s17, 0
      %p93 = por %p91, %p92
      %p94 = scmp.ne.s32.totalorder %s86, %s88
      %p95 = scmp.eq.s32.totalorder %s22, 1
      %p96 = por %p94, %p95
      %p97 = scmp.ne.s32.totalorder %s88, %s89
      %p98 = scmp.eq.s32.totalorder %s22, 0
      %p99 = por %p97, %p98
      %p100 = scmp.ne.s32.totalorder %s88, %s89
      %p101 = scmp.eq.s32.totalorder %s23, 1
      %p102 = por %p100, %p101
      %p104 = scmp.ne.s32.totalorder %s89, %s103
      %p105 = scmp.eq.s32.totalorder %s23, 0
      %p106 = por %p104, %p105
      %s107 = ssub.s32 %s24, %s36
      %s108 = ssub.s32 %s25, %s32
      %s109 = sor.u32 %s107, %s108
      %p110 = scmp.eq.s32.totalorder %s109, 0
      %s112 = sadd.s32 %s111, 1
      %s113 = scalar_select %p110, %s111, %s112
      %p116 = pneg %p110
      %p117 = scmp.eq.s32.totalorder %s17, 1
      %p118 = por %p116, %p117
      %p119 = scmp.ne.s32.totalorder %s111, %s114
      %p120 = scmp.eq.s32.totalorder %s17, 0
      %p121 = por %p119, %p120
      %p122 = scmp.ne.s32.totalorder %s111, %s114
      %p123 = scmp.eq.s32.totalorder %s22, 1
      %p124 = por %p122, %p123
      %p125 = scmp.ne.s32.totalorder %s114, %s115
      %p126 = scmp.eq.s32.totalorder %s22, 0
      %p127 = por %p125, %p126
      %p128 = scmp.ne.s32.totalorder %s114, %s115
      %p129 = scmp.eq.s32.totalorder %s23, 1
      %p130 = por %p128, %p129
      %p132 = scmp.ne.s32.totalorder %s115, %s131
      %p133 = scmp.eq.s32.totalorder %s23, 0
      %p134 = por %p132, %p133
      %s135 = ssub.s32 %s24, %s36
      %s136 = ssub.s32 %s25, %s32
      %s137 = sor.u32 %s135, %s136
      %p138 = scmp.eq.s32.totalorder %s137, 0
      %s140 = sadd.s32 %s139, 1
      %s141 = scalar_select %p138, %s139, %s140
      %p144 = pneg %p138
      %p145 = scmp.eq.s32.totalorder %s17, 1
      %p146 = por %p144, %p145
      %p147 = scmp.ne.s32.totalorder %s139, %s142
      %p148 = scmp.eq.s32.totalorder %s17, 0
      %p149 = por %p147, %p148
      %p150 = scmp.ne.s32.totalorder %s139, %s142
      %p151 = scmp.eq.s32.totalorder %s22, 1
      %p152 = por %p150, %p151
      %p153 = scmp.ne.s32.totalorder %s142, %s143
      %p154 = scmp.eq.s32.totalorder %s22, 0
      %p155 = por %p153, %p154
      %p156 = scmp.ne.s32.totalorder %s142, %s143
      %p157 = scmp.eq.s32.totalorder %s23, 1
      %p158 = por %p156, %p157
      %p160 = scmp.ne.s32.totalorder %s143, %s159
      %p161 = scmp.eq.s32.totalorder %s23, 0
      %p162 = por %p160, %p161
      %p163 = scmp.le.s32.totalorder 1, %s17
      %p164 = scmp.lt.s32.totalorder %s17, 3
      %p165 = pnand %p163, %p164
      %p166 = pneg %p165
      // Predicated region
      $region9: #{tpu_custom_call.1} parent=5 // pred_check
        _
      $region10: #{tpu_custom_call.1} parent=5 // pred_check_branch
        %168 = sbr.rel (%p165) target = $region12
      $region11: #{tpu_custom_call.1} parent=5 // pred_region
        %s169 = ssub.s32 %s17, 1
        // Predicated region
        $region13: #{tpu_custom_call.1} parent=11 // pred_check
          %p170 = pneg %p78
        $region14: #{tpu_custom_call.1} parent=11 // pred_check_branch
          %172 = sbr.rel (%p170) target = $region16
        $region15: #{tpu_custom_call.1} parent=11 // pred_region
          _
        $region16: #{tpu_custom_call.1} parent=11 // pred_fallthru
          _
        // Predicated region
        $region17: #{tpu_custom_call.1} parent=11 // pred_check
          %p173 = pneg %p99
        $region18: #{tpu_custom_call.1} parent=11 // pred_check_branch
          %175 = sbr.rel (%p173) target = $region20
        $region19: #{tpu_custom_call.1} parent=11 // pred_region
          _
        $region20: #{tpu_custom_call.1} parent=11 // pred_fallthru
          _
      $region12: #{tpu_custom_call.1} parent=5 // pred_fallthru
        _
      %p176 = scmp.lt.s32.totalorder %s17, 2
      // Predicated region
      $region21: #{tpu_custom_call.1} parent=5 // pred_check
        %p177 = pneg %p176
      $region22: #{tpu_custom_call.1} parent=5 // pred_check_branch
        %179 = sbr.rel (%p177) target = $region24
      $region23: #{tpu_custom_call.1} parent=5 // pred_region
        // Predicated region
        $region25: #{tpu_custom_call.1} parent=23 // pred_check
          %p180 = pneg %p51
        $region26: #{tpu_custom_call.1} parent=23 // pred_check_branch
          %182 = sbr.rel (%p180) target = $region28
        $region27: #{tpu_custom_call.1} parent=23 // pred_region
          %p183 = scmp.lt.s32.totalorder %s24, 1
          %s184 = scalar_select %p183, %s24, 1
          %p185 = scmp.lt.s32.totalorder %s25, 0
          %s186 = scalar_select %p185, %s25, 0
          %s187 = sadd.s32 %s186, %s184
          %s188 = smul.addr %s187, 8
          %s189 = scalar_lea.vmem %s0, %s188
        $region28: #{tpu_custom_call.1} parent=23 // pred_fallthru
          _
      $region24: #{tpu_custom_call.1} parent=5 // pred_fallthru
        _
      %p190 = scmp.le.s32.totalorder 1, %s17
      %p191 = scmp.lt.s32.totalorder %s17, 3
      %p192 = pnand %p190, %p191
      %p193 = pneg %p192
      // Predicated region
      $region29: #{tpu_custom_call.1} parent=5 // pred_check
        _
      $region30: #{tpu_custom_call.1} parent=5 // pred_check_branch
        %195 = sbr.rel (%p192) target = $region32
      $region31: #{tpu_custom_call.1} parent=5 // pred_region
        %s196 = ssub.s32 %s17, 1
        %p197 = scmp.lt.s32.totalorder %s26, 1
        %s198 = scalar_select %p197, %s26, 1
        %p199 = scmp.lt.s32.totalorder %s27, 0
        %s200 = scalar_select %p199, %s27, 0
        %s201 = sadd.s32 %s200, %s198
        %s202 = smul.addr %s201, 8
        %s203 = scalar_lea.vmem %s0, %s202
        %p204 = pneg %p57
        %p205 = pneg %p54
        %p206 = pneg %p78
        %p207 = pneg %p75
        %p208 = pneg %p99
        %p209 = pneg %p96
        %p210 = pneg %p127
        %p211 = pneg %p124
        %s212 = sand.u32 %s114, 1
        %s213 = scalar_lea.sflag [#allocation3], %s212
        %s214 = sand.u32 %s114, 1
        %s215 = smul.addr %s214, 8
        %s216 = scalar_lea.vmem [#allocation2], %s215
        %p217 = pneg %p155
        %p218 = pneg %p152
        %s219 = sand.u32 %s142, 1
        %s220 = scalar_lea.sflag [#allocation5], %s219
        %s221 = sand.u32 %s142, 1
        %s222 = smul.addr %s221, 8
        %s223 = scalar_lea.vmem [#allocation4], %s222
        %p224 = scmp.lt.s32.totalorder %s26, 1
        %s225 = scalar_select %p224, %s26, 1
        %p226 = scmp.lt.s32.totalorder %s27, 0
        %s227 = scalar_select %p226, %s27, 0
        %s228 = sadd.s32 %s227, %s225
        %s229 = smul.addr %s228, 8
        %s230 = scalar_lea.vmem %s0, %s229
        %v231 = vld [vmem:[%s230] sm:$0xff]
        %v232 = vld [vmem:[%s1] sm:$0xff]
        %v233 = vld [vmem:[%s1 + $0x8] sm:$0xff]
        %v234 = vld [vmem:[%s1 + $0x10] sm:$0xff]
        %v235 = vld [vmem:[%s1 + $0x18] sm:$0xff]
        %vm236 = vcmask 64512
        %v238 = vsel %vm236, %v232, 0
        %v241 = vsel %vm236, %v233, 0
        %v244 = vsel %vm236, %v234, 0
        %v247 = vsel %vm236, %v235, 0
        %249 = vmatprep.subr.mxu0 0.0
        %250 = vmatpush1.msra.mxu0 %v231
        %251 = vmatprep.subr.mxu0 0.0
        %252 = vmatpush1.msra.mxu0 0.0
        %253 = vmatprep.subr.mxu0 0.0
        %254 = vmatpush1.msra.mxu0 0.0
        %255 = vmatprep.subr.mxu0 0.0
        %256 = vmatpush1.msra.mxu0 0.0
        %257 = vmatprep.subr.mxu0 0.0
        %258 = vmatpush1.msra.mxu0 0.0
        %259 = vmatprep.subr.mxu0 0.0
        %260 = vmatpush1.msra.mxu0 0.0
        %261 = vmatprep.subr.mxu0 0.0
        %262 = vmatpush1.msra.mxu0 0.0
        %263 = vmatprep.subr.mxu0 0.0
        %264 = vmatpush1.msra.mxu0 0.0
        %265 = vmatprep.subr.mxu0 0.0
        %266 = vmatpush1.msra.mxu0 0.0
        %267 = vmatprep.subr.mxu0 0.0
        %268 = vmatpush1.msra.mxu0 0.0
        %269 = vmatprep.subr.mxu0 0.0
        %270 = vmatpush1.msra.mxu0 0.0
        %271 = vmatprep.subr.mxu0 0.0
        %272 = vmatpush1.msra.mxu0 0.0
        %273 = vmatprep.subr.mxu0 0.0
        %274 = vmatpush1.msra.mxu0 0.0
        %275 = vmatprep.subr.mxu0 0.0
        %276 = vmatpush1.msra.mxu0 0.0
        %277 = vmatprep.subr.mxu0 0.0
        %278 = vmatpush1.msra.mxu0 0.0
        %279 = vmatprep.subr.mxu0 0.0
        %280 = vmatpush1.msra.mxu0 0.0
        %281 = vmatprep.subr.mxu0 0.0
        %282 = vmatpush1.msra.mxu0 0.0
        %283 = vmatprep.subr.mxu0 0.0
        %284 = vmatpush1.msra.mxu0 0.0
        %285 = vmatprep.subr.mxu0 0.0
        %286 = vmatpush1.msra.mxu0 0.0
        %287 = vmatprep.subr.mxu0 0.0
        %288 = vmatpush1.msra.mxu0 0.0
        %289 = vmatprep.subr.mxu0 0.0
        %290 = vmatpush1.msra.mxu0 0.0
        %291 = vmatprep.subr.mxu0 0.0
        %292 = vmatpush1.msra.mxu0 0.0
        %293 = vmatprep.subr.mxu0 0.0
        %294 = vmatpush1.msra.mxu0 0.0
        %295 = vmatprep.subr.mxu0 0.0
        %296 = vmatpush1.msra.mxu0 0.0
        %297 = vmatprep.subr.mxu0 0.0
        %298 = vmatpush1.msra.mxu0 0.0
        %299 = vmatprep.subr.mxu0 0.0
        %300 = vmatpush1.msra.mxu0 0.0
        %301 = vmatprep.subr.mxu0 0.0
        %302 = vmatpush1.msra.mxu0 0.0
        %303 = vmatprep.subr.mxu0 0.0
        %304 = vmatpush1.msra.mxu0 0.0
        %305 = vmatprep.subr.mxu0 0.0
        %306 = vmatpush1.msra.mxu0 0.0
        %307 = vmatprep.subr.mxu0 0.0
        %308 = vmatpush1.msra.mxu0 0.0
        %309 = vmatprep.subr.mxu0 0.0
        %310 = vmatpush1.msra.mxu0 0.0
        %311 = vmatprep.subr.mxu0 0.0
        %312 = vmatpush1.msra.mxu0 0.0
        %313 = vmatprep.mubr.f32.mxu0 0.0
        %314 = vmatmul.mubr.f32.gmra.mrb[0].mxu0 %v238
        %v315 = vpop.f32.mrb[0].mxu0
        %v316 = vadd.f32 0.0, %v315
        %v317 = vpop.f32.mrb[0].mxu0
        %318 = vmatprep.mubr.f32.mxu0 0.0
        %319 = vmatmul.mubr.f32.gmra.mrb[0].mxu0 %v241
        %v320 = vpop.f32.mrb[0].mxu0
        %v321 = vadd.f32 0.0, %v320
        %v322 = vpop.f32.mrb[0].mxu0
        %323 = vmatprep.mubr.f32.mxu0 0.0
        %324 = vmatmul.mubr.f32.gmra.mrb[0].mxu0 %v244
        %v325 = vpop.f32.mrb[0].mxu0
        %v326 = vadd.f32 0.0, %v325
        %v327 = vpop.f32.mrb[0].mxu0
        %328 = vmatprep.mubr.f32.mxu0 0.0
        %329 = vmatmul.mubr.f32.gmra.mrb[0].mxu0 %v247
        %v330 = vpop.f32.mrb[0].mxu0
        %v331 = vadd.f32 0.0, %v330
        %v332 = vpop.f32.mrb[0].mxu0
        %333 = vdwg.mxu0
        %vm334 = vcmask 1048064
        %335 = vrot.lane.b32.xlu0 %v326, 64
        %v336 = vpop.permute.xlu0 %335
        %v337 = vsel %vm334, %v336, %v326
        %338 = vrot.lane.b32.xlu0 %v337, 64
        %v339 = vpop.permute.xlu0 %338
        %v340 = vsel %vm334, %v339, %v326
        %341 = vrot.lane.b32.xlu0 %v331, 64
        %v342 = vpop.permute.xlu0 %341
        %v343 = vsel %vm334, %v342, %v331
        %344 = vrot.lane.b32.xlu0 %v343, 64
        %v345 = vpop.permute.xlu0 %344
        %v346 = vsel %vm334, %v345, %v331
        %v347 = vlaneseq
        %v348 = vand.u32 %v347, 127
        %vm349 = vcmp.lt.s32.totalorder %v348, 0
        %v350 = vsub.s32 0, %v348
        %v351 = vsel %vm349, %v350, %v348
        %v352 = vshrl.u32 %v351, 4
        %v353 = vand.u32 %v351, 15
        %v354 = vsub.s32 0, %v353
        %v355 = vsel %vm349, %v354, %v353
        %vm356 = vcmp.ne.s32.totalorder %v355, 0
        %vm357 = vcmp.lt.s32.totalorder %v355, 0
        %vm358 = vmand %vm357, %vm356
        %v359 = vadd.s32 %v355, 16
        %v360 = vsel %vm358, %v359, %v355
        %v361 = vld [vmem:[%s2] sm:$0xff]
        %vm362 = vcmp.eq.s32.totalorder %v360, 0
        %v363 = vsel %vm362, 1, 0
        %vm364 = vcmp.eq.s32.totalorder %v363, 1
        %366 = vrot.lane.b32.xlu0 %v340, 65
        %v367 = vpop.permute.xlu0 %366
        %v369 = vsel %vm364, 0.0, %v367
        %v370 = vadd.f32 %v316, %v369
        %372 = vset.pattern.permute.xlu0 0
        %373 = vperm.xlu0 %372, %v361
        %v374 = vpop.permute.xlu0 %373
        %v376 = vadd.f32 %v370, %v374
        %vm377 = vcmp.eq.s32.totalorder %v360, 15
        %v378 = vsel %vm377, 1, 0
        %vm379 = vcmp.eq.s32.totalorder %v378, 1
        %381 = vrot.lane.b32.xlu0 %v346, 127
        %v382 = vpop.permute.xlu0 %381
        %v384 = vsel %vm379, 0.0, %v382
        %v385 = vadd.f32 %v321, %v384
        %v386 = vadd.f32 %v385, %v374
        %vm387 = vcmask 523264
        %388 = vst.msk [vmem:[%s216] sm:$0xff] %vm387, %v376
        %389 = vst.msk [vmem:[%s223] sm:$0xff] %vm387, %v386
        %s390 = sand.u32 %s114, 1
        %s391 = scalar_lea.sflag [#allocation3], %s390
        %s392 = sand.u32 %s114, 1
        %s393 = smul.addr %s392, 8
        %s394 = scalar_lea.vmem [#allocation2], %s393
        %s395 = sand.u32 %s142, 1
        %s396 = scalar_lea.sflag [#allocation5], %s395
        %s397 = sand.u32 %s142, 1
        %s398 = smul.addr %s397, 8
        %s399 = scalar_lea.vmem [#allocation4], %s398
        // Predicated region
        $region33: #{tpu_custom_call.1} parent=31 // pred_check
          %p400 = pneg %p124
        $region34: #{tpu_custom_call.1} parent=31 // pred_check_branch
          %402 = sbr.rel (%p400) target = $region36
        $region35: #{tpu_custom_call.1} parent=31 // pred_region
          %s404 = ssub.s32 128, 128
          %405 = vsyncadd %s391, %s404
          %s406 = sadd.s32 %s27, %s26
          %s407 = smul.addr %s406, 128
          %s408 = scalar_lea.hbm %s3, %s407
          %s410 = sshll.u32 %s394, 4
          %s411 = int_to_ptr.vmem [resolvable:$true] %s410
          %413 = dma.vmem_to_hbm [thread:$0]  %s411, 128, %s408, %s391
        $region36: #{tpu_custom_call.1} parent=31 // pred_fallthru
          _
        // Predicated region
        $region37: #{tpu_custom_call.1} parent=31 // pred_check
          %p414 = pneg %p152
        $region38: #{tpu_custom_call.1} parent=31 // pred_check_branch
          %416 = sbr.rel (%p414) target = $region40
        $region39: #{tpu_custom_call.1} parent=31 // pred_region
          %s418 = ssub.s32 128, 128
          %419 = vsyncadd %s396, %s418
          %s420 = sadd.s32 %s27, %s26
          %s421 = smul.addr %s420, 128
          %s422 = scalar_lea.hbm %s4, %s421
          %s424 = sshll.u32 %s399, 4
          %s425 = int_to_ptr.vmem [resolvable:$true] %s424
          %427 = dma.vmem_to_hbm [thread:$0]  %s425, 128, %s422, %s396
        $region40: #{tpu_custom_call.1} parent=31 // pred_fallthru
          _
      $region32: #{tpu_custom_call.1} parent=5 // pred_fallthru
        _
      %p428 = scmp.le.s32.totalorder 2, %s17
      // Predicated region
      $region41: #{tpu_custom_call.1} parent=5 // pred_check
        %p429 = pneg %p428
      $region42: #{tpu_custom_call.1} parent=5 // pred_check_branch
        %431 = sbr.rel (%p429) target = $region44
      $region43: #{tpu_custom_call.1} parent=5 // pred_region
        %s432 = ssub.s32 %s17, 2
        // Predicated region
        $region45: #{tpu_custom_call.1} parent=43 // pred_check
          %p433 = pneg %p130
        $region46: #{tpu_custom_call.1} parent=43 // pred_check_branch
          %435 = sbr.rel (%p433) target = $region48
        $region47: #{tpu_custom_call.1} parent=43 // pred_region
          %s436 = sand.u32 %s115, 1
          %s437 = scalar_lea.sflag [#allocation3], %s436
          %s438 = sand.u32 %s115, 1
          %s439 = smul.addr %s438, 8
          %s440 = scalar_lea.vmem [#allocation2], %s439
          %441 = dma.done %s437, 128
        $region48: #{tpu_custom_call.1} parent=43 // pred_fallthru
          _
        // Predicated region
        $region49: #{tpu_custom_call.1} parent=43 // pred_check
          %p442 = pneg %p158
        $region50: #{tpu_custom_call.1} parent=43 // pred_check_branch
          %444 = sbr.rel (%p442) target = $region52
        $region51: #{tpu_custom_call.1} parent=43 // pred_region
          %s445 = sand.u32 %s143, 1
          %s446 = scalar_lea.sflag [#allocation5], %s445
          %s447 = sand.u32 %s143, 1
          %s448 = smul.addr %s447, 8
          %s449 = scalar_lea.vmem [#allocation4], %s448
          %450 = dma.done %s446, 128
        $region52: #{tpu_custom_call.1} parent=43 // pred_fallthru
          _
      $region44: #{tpu_custom_call.1} parent=5 // pred_fallthru
        _
    $region6: #{tpu_custom_call.1} parent=1 // loop_footer
      %s21 = sadd.s32 1, %s17
    $region7: #{tpu_custom_call.1} parent=1 // loop_footer_branch
      %16 = sbr.rel target = $region3
    $region8: #{tpu_custom_call.1} parent=1 // loop_exit
      _
    %451 = vsyncpa [#allocation3], 1
    %s452 = scalar_lea.sflag [#allocation3], 1
    %453 = vsyncpa %s452, 1
    %454 = vsyncpa [#allocation5], 1
    %s455 = scalar_lea.sflag [#allocation5], 1
    %456 = vsyncpa %s455, 1

</llo_original>
